<compile_context>
chip_gen: v5e
topology: v5e:2x2
jax: 0.10.0
libtpu: 0.0.40
codegen_flags: <defaults>
</compile_context>

<pallas_src>
import functools
import math

import jax
import jax.numpy as jnp
from jax.experimental import pallas as pl
from jax.experimental.pallas import tpu as pltpu


# ----------------------------------------------------------------------------
# Kernel 1: LN1 + QKV projection + multi-head attention + out-proj + residual
# ----------------------------------------------------------------------------
def _attn_block_kernel(x_ref, g1_ref, b1_ref, wqkv_ref, bqkv_ref,
                       wo_ref, bo_ref, o_ref, y_scr, *, n_head, scale):
    x = x_ref[0]                                            # (T, C)
    C = x.shape[-1]
    D = C // n_head

    # ---- LayerNorm(ln1): statistics in f32 ----
    xf = x.astype(jnp.float32)
    mean = jnp.mean(xf, axis=-1, keepdims=True)
    xc = xf - mean
    var = jnp.mean(xc * xc, axis=-1, keepdims=True)
    xn_f32 = (xc * jax.lax.rsqrt(var + 1e-5)) * g1_ref[...].astype(jnp.float32) \
             + b1_ref[...].astype(jnp.float32)
    xn = xn_f32.astype(x.dtype)                             # MXU operand dtype

    # ---- merged QKV projection: one (T,C) @ (C,3C) matmul ----
    qkv = jnp.dot(xn, wqkv_ref[...], preferred_element_type=jnp.float32) \
          + bqkv_ref[...].astype(jnp.float32)               # (T, 3C) f32
    qkv_lp = qkv.astype(x.dtype)

    # ---- per-head attention; heads written back into packed layout ----
    for h in range(n_head):
        # scale folded into q (cheaper than scaling the (T,T) score matrix)
        qh = (qkv[:, h * D:(h + 1) * D] * scale).astype(x.dtype)       # (T, D)
        kh = qkv_lp[:, C + h * D:C + (h + 1) * D]                      # (T, D)
        vh = qkv_lp[:, 2 * C + h * D:2 * C + (h + 1) * D]              # (T, D)
        s = jax.lax.dot_general(qh, kh, (((1,), (1,)), ((), ())),
                                preferred_element_type=jnp.float32)    # (T, T)
        s = s - jnp.max(s, axis=-1, keepdims=True)
        p = jnp.exp(s)
        p = p * pl.reciprocal(jnp.sum(p, axis=-1, keepdims=True), approx=True)
        yh = jnp.dot(p.astype(x.dtype), vh,
                     preferred_element_type=jnp.float32)               # (T, D)
        y_scr[:, h * D:(h + 1) * D] = yh.astype(y_scr.dtype)

    # ---- single full-width out-projection + residual (= ln1(q)) ----
    acc = xn_f32 + bo_ref[...].astype(jnp.float32) \
          + jnp.dot(y_scr[...], wo_ref[...], preferred_element_type=jnp.float32)
    o_ref[0] = acc.astype(o_ref.dtype)


# ----------------------------------------------------------------------------
# Kernel 2: LN3 + Linear + exact GELU + Linear + residual
# ----------------------------------------------------------------------------
def _mlp_block_kernel(x_ref, g3_ref, b3_ref, w1_ref, b1_ref, w2_ref, b2_ref,
                      o_ref):
    x = x_ref[...]                                          # (tm, C)
    xf = x.astype(jnp.float32)
    mean = jnp.mean(xf, axis=-1, keepdims=True)
    xc = xf - mean
    var = jnp.mean(xc * xc, axis=-1, keepdims=True)
    xn = ((xc * jax.lax.rsqrt(var + 1e-5)) * g3_ref[...].astype(jnp.float32)
          + b3_ref[...].astype(jnp.float32)).astype(x.dtype)

    h = jnp.dot(xn, w1_ref[...], preferred_element_type=jnp.float32) \
        + b1_ref[...].astype(jnp.float32)                   # (tm, 4C) f32
    # exact erf GELU (matches torch.nn.GELU() default)
    h = 0.5 * h * (1.0 + jax.lax.erf(h * 0.7071067811865476))
    out = jnp.dot(h.astype(x.dtype), w2_ref[...],
                  preferred_element_type=jnp.float32) \
          + b2_ref[...].astype(jnp.float32)                 # (tm, C) f32

    o_ref[...] = (xf + out).astype(o_ref.dtype)             # fused residual


# ----------------------------------------------------------------------------
# pallas_call wrappers
# ----------------------------------------------------------------------------
def fused_attention(x, g1, b1, wqkv, bqkv, wo, bo, n_head):
    B, T, C = x.shape
    D = C // n_head
    kern = functools.partial(_attn_block_kernel, n_head=n_head,
                             scale=1.0 / math.sqrt(D))
    return pl.pallas_call(
        kern,
        out_shape=jax.ShapeDtypeStruct((B, T, C), x.dtype),
        grid=(B,),
        in_specs=[pl.BlockSpec((1, T, C), lambda b: (b, 0, 0)),
                  pl.BlockSpec((1, C), lambda b: (0, 0)),
                  pl.BlockSpec((1, C), lambda b: (0, 0)),
                  pl.BlockSpec((C, 3 * C), lambda b: (0, 0)),
                  pl.BlockSpec((1, 3 * C), lambda b: (0, 0)),
                  pl.BlockSpec((C, C), lambda b: (0, 0)),
                  pl.BlockSpec((1, C), lambda b: (0, 0))],
        out_specs=pl.BlockSpec((1, T, C), lambda b: (b, 0, 0)),
        scratch_shapes=[pltpu.VMEM((T, C), x.dtype)],
        compiler_params=pltpu.CompilerParams(
            dimension_semantics=("parallel",)),
    )(x, g1.reshape(1, C), b1.reshape(1, C), wqkv, bqkv.reshape(1, 3 * C),
      wo, bo.reshape(1, C))


def _pick_row_tile(M):
    # largest row tile (multiple of 8) that evenly divides M, else full M
    for t in (512, 256, 128, 64, 32, 16, 8):
        if M % t == 0:
            return t
    return M


def fused_mlp_residual(x2d, g3, b3, w1, b1, w2, b2):
    M, C = x2d.shape
    H = w1.shape[1]
    tm = _pick_row_tile(M)
    return pl.pallas_call(
        _mlp_block_kernel,
        out_shape=jax.ShapeDtypeStruct((M, C), x2d.dtype),
        grid=(M // tm,),
        in_specs=[pl.BlockSpec((tm, C), lambda i: (i, 0)),
                  pl.BlockSpec((1, C), lambda i: (0, 0)),
                  pl.BlockSpec((1, C), lambda i: (0, 0)),
                  pl.BlockSpec((C, H), lambda i: (0, 0)),
                  pl.BlockSpec((1, H), lambda i: (0, 0)),
                  pl.BlockSpec((H, C), lambda i: (0, 0)),
                  pl.BlockSpec((1, C), lambda i: (0, 0))],
        out_specs=pl.BlockSpec((tm, C), lambda i: (i, 0)),
        compiler_params=pltpu.CompilerParams(
            dimension_semantics=("parallel",)),
    )(x2d, g3.reshape(1, C), b3.reshape(1, C), w1, b1.reshape(1, H),
      w2, b2.reshape(1, C))


# ----------------------------------------------------------------------------
# Module-level forward (cross=False, enc=False, masks=None)
# ----------------------------------------------------------------------------
def attention_block_forward(k, q, v, p, n_head):
    B, T, C = q.shape
    # one-time weight fusion (q|k|v columns); in a real model do this at init
    wqkv = jnp.concatenate([p["wq"], p["wk"], p["wv"]], axis=1)   # (C, 3C)
    bqkv = jnp.concatenate([p["bq"], p["bk"], p["bv"]], axis=0)   # (3C,)

    x = fused_attention(q, p["ln1_g"], p["ln1_b"], wqkv, bqkv,
                        p["wo"], p["bo"], n_head)                 # (B, T, C)
    x = fused_mlp_residual(x.reshape(B * T, C),
                           p["ln3_g"], p["ln3_b"],
                           p["w1"], p["b1"], p["w2"], p["b2"])
    return x.reshape(B, T, C)


# ----------------------------------------------------------------------------
# Pure-JAX reference (correctness check)
# ----------------------------------------------------------------------------
def reference_forward(k, q, v, p, n_head):
    def ln(x, g, b):
        mu = jnp.mean(x, -1, keepdims=True)
        var = jnp.mean((x - mu) ** 2, -1, keepdims=True)
        return (x - mu) / jnp.sqrt(var + 1e-5) * g + b

    def lin(x, w, b):
        return x @ w + b

    def mha(kk, qq, vv):
        B, T, C = kk.shape
        D = C // n_head
        kh = lin(kk, p["wk"], p["bk"]).reshape(B, T, n_head, D).transpose(0, 2, 1, 3)
        qh = lin(qq, p["wq"], p["bq"]).reshape(B, T, n_head, D).transpose(0, 2, 1, 3)
        vh = lin(vv, p["wv"], p["bv"]).reshape(B, T, n_head, D).transpose(0, 2, 1, 3)
        s = jnp.einsum("bhqd,bhkd->bhqk", qh, kh) * (1.0 / math.sqrt(D))
        a = jax.nn.softmax(s, axis=-1)
        y = jnp.einsum("bhqk,bhkd->bhqd", a, vh).transpose(0, 2, 1, 3).reshape(B, T, C)
        return lin(y, p["wo"], p["bo"])

    x = ln(q, p["ln1_g"], p["ln1_b"])
    x = x + mha(x, x, x)
    x3 = ln(x, p["ln3_g"], p["ln3_b"])
    h = lin(x3, p["w1"], p["b1"])
    h = 0.5 * h * (1.0 + jax.lax.erf(h * 0.7071067811865476))
    x = x + lin(h, p["w2"], p["b2"])
    return x


# ----------------------------------------------------------------------------
# Deterministic parameter init (shapes from AttentionBlock.__init__, cross=False)
# ----------------------------------------------------------------------------
def init_params(key, n_embd):
    ks = jax.random.split(key, 16)
    w = lambda k, i, o: 0.05 * jax.random.normal(k, (i, o), jnp.float32)
    b = lambda k, o: 0.05 * jax.random.normal(k, (o,), jnp.float32)
    return {
        "ln1_g": 1.0 + 0.1 * jax.random.normal(ks[0], (n_embd,), jnp.float32),
        "ln1_b": 0.1 * jax.random.normal(ks[1], (n_embd,), jnp.float32),
        "ln3_g": 1.0 + 0.1 * jax.random.normal(ks[2], (n_embd,), jnp.float32),
        "ln3_b": 0.1 * jax.random.normal(ks[3], (n_embd,), jnp.float32),
        "wk": w(ks[4], n_embd, n_embd), "bk": b(ks[5], n_embd),
        "wq": w(ks[6], n_embd, n_embd), "bq": b(ks[7], n_embd),
        "wv": w(ks[8], n_embd, n_embd), "bv": b(ks[9], n_embd),
        "wo": w(ks[10], n_embd, n_embd), "bo": b(ks[11], n_embd),
        "w1": w(ks[12], n_embd, 4 * n_embd), "b1": b(ks[13], 4 * n_embd),
        "w2": w(ks[14], 4 * n_embd, n_embd), "b2": b(ks[15], n_embd),
    }


if __name__ == "__main__":
    B, T, C, n_head = 2, 8, 32, 4
    key = jax.random.PRNGKey(0)
    kq, kk_, kv, kp = jax.random.split(key, 4)
    q = jax.random.normal(kq, (B, T, C), jnp.float32)
    k = jax.random.normal(kk_, (B, T, C), jnp.float32)   # unused in cross=False path
    v = jax.random.normal(kv, (B, T, C), jnp.float32)    # unused in cross=False path
    params = init_params(kp, C)

    out = attention_block_forward(k, q, v, params, n_head)
    out = jax.block_until_ready(out)

    ref = reference_forward(k, q, v, params, n_head)
    assert out.shape == (B, T, C)
    max_err = float(jnp.max(jnp.abs(out - ref)))
    assert max_err < 1e-2, f"max abs error too large: {max_err}"
    print("KERNEL_OK")
</pallas_src>

<mosaic_0001>
module attributes {stable_mosaic.version = 11 : i64} {
  func.func @_attn_block_kernel(%arg0: i32, %arg1: memref<1x8x32xf32, #tpu.memory_space<vmem>>, %arg2: memref<1x32xf32, #tpu.memory_space<vmem>>, %arg3: memref<1x32xf32, #tpu.memory_space<vmem>>, %arg4: memref<32x96xf32, #tpu.memory_space<vmem>>, %arg5: memref<1x96xf32, #tpu.memory_space<vmem>>, %arg6: memref<32x32xf32, #tpu.memory_space<vmem>>, %arg7: memref<1x32xf32, #tpu.memory_space<vmem>>, %arg8: memref<1x8x32xf32, #tpu.memory_space<vmem>>, %arg9: memref<8x32xf32, #tpu.memory_space<vmem>>) attributes {dimension_semantics = [#tpu.dimension_semantics<parallel>], iteration_bounds = array<i64: 2>, scalar_prefetch = 0 : i64, scratch_operands = 1 : i64, tpu.core_type = #tpu.core_type<tc>, window_params = [{transform_indices = @transform_0, window_bounds = array<i64: 1, 8, 32>}, {pipeline_mode = #tpu.pipeline_mode<synchronous>, transform_indices = @transform_1, window_bounds = array<i64: 1, 32>}, {pipeline_mode = #tpu.pipeline_mode<synchronous>, transform_indices = @transform_2, window_bounds = array<i64: 1, 32>}, {pipeline_mode = #tpu.pipeline_mode<synchronous>, transform_indices = @transform_3, window_bounds = array<i64: 32, 96>}, {pipeline_mode = #tpu.pipeline_mode<synchronous>, transform_indices = @transform_4, window_bounds = array<i64: 1, 96>}, {pipeline_mode = #tpu.pipeline_mode<synchronous>, transform_indices = @transform_5, window_bounds = array<i64: 32, 32>}, {pipeline_mode = #tpu.pipeline_mode<synchronous>, transform_indices = @transform_6, window_bounds = array<i64: 1, 32>}, {transform_indices = @transform_7, window_bounds = array<i64: 1, 8, 32>}]} {
    %c0 = arith.constant 0 : index
    %c0_0 = arith.constant 0 : index
    %c0_1 = arith.constant 0 : index
    %0 = vector.load %arg1[%c0, %c0_0, %c0_1] : memref<1x8x32xf32, #tpu.memory_space<vmem>>, vector<1x8x32xf32>
    %1 = vector.shape_cast %0 : vector<1x8x32xf32> to vector<8x32xf32>
    %cst = arith.constant dense<0.000000e+00> : vector<8xf32>
    %2 = vector.multi_reduction <add>, %1, %cst [1] : vector<8x32xf32> to vector<8xf32>
    %3 = vector.shape_cast %2 : vector<8xf32> to vector<8x1xf32>
    %cst_2 = arith.constant 3.200000e+01 : f32
    %4 = vector.broadcast %cst_2 : f32 to vector<8x1xf32>
    %5 = arith.divf %3, %4 : vector<8x1xf32>
    %6 = vector.broadcast %5 : vector<8x1xf32> to vector<8x32xf32>
    %7 = arith.subf %1, %6 : vector<8x32xf32>
    %8 = arith.mulf %7, %7 : vector<8x32xf32>
    %cst_3 = arith.constant dense<0.000000e+00> : vector<8xf32>
    %9 = vector.multi_reduction <add>, %8, %cst_3 [1] : vector<8x32xf32> to vector<8xf32>
    %10 = vector.shape_cast %9 : vector<8xf32> to vector<8x1xf32>
    %cst_4 = arith.constant 3.200000e+01 : f32
    %11 = vector.broadcast %cst_4 : f32 to vector<8x1xf32>
    %12 = arith.divf %10, %11 : vector<8x1xf32>
    %cst_5 = arith.constant 9.99999974E-6 : f32
    %13 = vector.broadcast %cst_5 : f32 to vector<8x1xf32>
    %14 = arith.addf %12, %13 : vector<8x1xf32>
    %15 = math.rsqrt %14 : vector<8x1xf32>
    %16 = vector.broadcast %15 : vector<8x1xf32> to vector<8x32xf32>
    %17 = arith.mulf %7, %16 : vector<8x32xf32>
    %c0_6 = arith.constant 0 : index
    %c0_7 = arith.constant 0 : index
    %18 = vector.load %arg2[%c0_6, %c0_7] : memref<1x32xf32, #tpu.memory_space<vmem>>, vector<1x32xf32>
    %19 = vector.broadcast %18 : vector<1x32xf32> to vector<8x32xf32>
    %20 = arith.mulf %17, %19 : vector<8x32xf32>
    %c0_8 = arith.constant 0 : index
    %c0_9 = arith.constant 0 : index
    %21 = vector.load %arg3[%c0_8, %c0_9] : memref<1x32xf32, #tpu.memory_space<vmem>>, vector<1x32xf32>
    %22 = vector.broadcast %21 : vector<1x32xf32> to vector<8x32xf32>
    %23 = arith.addf %20, %22 : vector<8x32xf32>
    %c0_10 = arith.constant 0 : index
    %c0_11 = arith.constant 0 : index
    %24 = vector.load %arg4[%c0_10, %c0_11] : memref<32x96xf32, #tpu.memory_space<vmem>>, vector<32x96xf32>
    %cst_12 = arith.constant dense<0.000000e+00> : vector<8x96xf32>
    %25 = tpu.matmul %23, %24, %cst_12 {dimension_numbers = #tpu.dot_dimension_numbers<[1], [0], [0], [1], [0, 0, 1, 1], [], []>} : vector<8x32xf32>, vector<32x96xf32>, vector<8x96xf32> -> vector<8x96xf32>
    %c0_13 = arith.constant 0 : index
    %c0_14 = arith.constant 0 : index
    %26 = vector.load %arg5[%c0_13, %c0_14] : memref<1x96xf32, #tpu.memory_space<vmem>>, vector<1x96xf32>
    %27 = vector.broadcast %26 : vector<1x96xf32> to vector<8x96xf32>
    %28 = arith.addf %25, %27 : vector<8x96xf32>
    %29 = vector.extract_strided_slice %28 {offsets = [0, 0], sizes = [8, 8], strides = [1, 1]} : vector<8x96xf32> to vector<8x8xf32>
    %cst_15 = arith.constant 0.353553385 : f32
    %30 = vector.broadcast %cst_15 : f32 to vector<8x8xf32>
    %31 = arith.mulf %29, %30 : vector<8x8xf32>
    %32 = vector.extract_strided_slice %28 {offsets = [0, 32], sizes = [8, 8], strides = [1, 1]} : vector<8x96xf32> to vector<8x8xf32>
    %33 = vector.extract_strided_slice %28 {offsets = [0, 64], sizes = [8, 8], strides = [1, 1]} : vector<8x96xf32> to vector<8x8xf32>
    %cst_16 = arith.constant dense<0.000000e+00> : vector<8x8xf32>
    %34 = tpu.matmul %31, %32, %cst_16 {dimension_numbers = #tpu.dot_dimension_numbers<[1], [1], [0], [0], [0, 0, 1, 0], [], []>} : vector<8x8xf32>, vector<8x8xf32>, vector<8x8xf32> -> vector<8x8xf32>
    %cst_17 = arith.constant dense<0xFF800000> : vector<8xf32>
    %35 = vector.multi_reduction <maximumf>, %34, %cst_17 [1] : vector<8x8xf32> to vector<8xf32>
    %36 = vector.shape_cast %35 : vector<8xf32> to vector<8x1xf32>
    %37 = vector.broadcast %36 : vector<8x1xf32> to vector<8x8xf32>
    %38 = arith.subf %34, %37 : vector<8x8xf32>
    %39 = math.exp %38 : vector<8x8xf32>
    %cst_18 = arith.constant dense<0.000000e+00> : vector<8xf32>
    %40 = vector.multi_reduction <add>, %39, %cst_18 [1] : vector<8x8xf32> to vector<8xf32>
    %41 = vector.shape_cast %40 : vector<8xf32> to vector<8x1xf32>
    %42 = tpu.reciprocal %41 {approx = true} : vector<8x1xf32> -> vector<8x1xf32>
    %43 = vector.broadcast %42 : vector<8x1xf32> to vector<8x8xf32>
    %44 = arith.mulf %39, %43 : vector<8x8xf32>
    %cst_19 = arith.constant dense<0.000000e+00> : vector<8x8xf32>
    %45 = tpu.matmul %44, %33, %cst_19 {dimension_numbers = #tpu.dot_dimension_numbers<[1], [0], [0], [1], [0, 0, 1, 1], [], []>} : vector<8x8xf32>, vector<8x8xf32>, vector<8x8xf32> -> vector<8x8xf32>
    %c0_20 = arith.constant 0 : index
    %c0_21 = arith.constant 0 : index
    %46 = vector.load %arg9[%c0_20, %c0_21] : memref<8x32xf32, #tpu.memory_space<vmem>>, vector<8x8xf32>
    tpu.vector_store %arg9[%c0_20, %c0_21], %45 {strides = array<i32>} : memref<8x32xf32, #tpu.memory_space<vmem>>, vector<8x8xf32>,
    %47 = vector.extract_strided_slice %28 {offsets = [0, 8], sizes = [8, 8], strides = [1, 1]} : vector<8x96xf32> to vector<8x8xf32>
    %cst_22 = arith.constant 0.353553385 : f32
    %48 = vector.broadcast %cst_22 : f32 to vector<8x8xf32>
    %49 = arith.mulf %47, %48 : vector<8x8xf32>
    %50 = vector.extract_strided_slice %28 {offsets = [0, 40], sizes = [8, 8], strides = [1, 1]} : vector<8x96xf32> to vector<8x8xf32>
    %51 = vector.extract_strided_slice %28 {offsets = [0, 72], sizes = [8, 8], strides = [1, 1]} : vector<8x96xf32> to vector<8x8xf32>
    %cst_23 = arith.constant dense<0.000000e+00> : vector<8x8xf32>
    %52 = tpu.matmul %49, %50, %cst_23 {dimension_numbers = #tpu.dot_dimension_numbers<[1], [1], [0], [0], [0, 0, 1, 0], [], []>} : vector<8x8xf32>, vector<8x8xf32>, vector<8x8xf32> -> vector<8x8xf32>
    %cst_24 = arith.constant dense<0xFF800000> : vector<8xf32>
    %53 = vector.multi_reduction <maximumf>, %52, %cst_24 [1] : vector<8x8xf32> to vector<8xf32>
    %54 = vector.shape_cast %53 : vector<8xf32> to vector<8x1xf32>
    %55 = vector.broadcast %54 : vector<8x1xf32> to vector<8x8xf32>
    %56 = arith.subf %52, %55 : vector<8x8xf32>
    %57 = math.exp %56 : vector<8x8xf32>
    %cst_25 = arith.constant dense<0.000000e+00> : vector<8xf32>
    %58 = vector.multi_reduction <add>, %57, %cst_25 [1] : vector<8x8xf32> to vector<8xf32>
    %59 = vector.shape_cast %58 : vector<8xf32> to vector<8x1xf32>
    %60 = tpu.reciprocal %59 {approx = true} : vector<8x1xf32> -> vector<8x1xf32>
    %61 = vector.broadcast %60 : vector<8x1xf32> to vector<8x8xf32>
    %62 = arith.mulf %57, %61 : vector<8x8xf32>
    %cst_26 = arith.constant dense<0.000000e+00> : vector<8x8xf32>
    %63 = tpu.matmul %62, %51, %cst_26 {dimension_numbers = #tpu.dot_dimension_numbers<[1], [0], [0], [1], [0, 0, 1, 1], [], []>} : vector<8x8xf32>, vector<8x8xf32>, vector<8x8xf32> -> vector<8x8xf32>
    %c0_27 = arith.constant 0 : index
    %c8 = arith.constant 8 : index
    %64 = vector.load %arg9[%c0_27, %c8] : memref<8x32xf32, #tpu.memory_space<vmem>>, vector<8x8xf32>
    tpu.vector_store %arg9[%c0_27, %c8], %63 {strides = array<i32>} : memref<8x32xf32, #tpu.memory_space<vmem>>, vector<8x8xf32>,
    %65 = vector.extract_strided_slice %28 {offsets = [0, 16], sizes = [8, 8], strides = [1, 1]} : vector<8x96xf32> to vector<8x8xf32>
    %cst_28 = arith.constant 0.353553385 : f32
    %66 = vector.broadcast %cst_28 : f32 to vector<8x8xf32>
    %67 = arith.mulf %65, %66 : vector<8x8xf32>
    %68 = vector.extract_strided_slice %28 {offsets = [0, 48], sizes = [8, 8], strides = [1, 1]} : vector<8x96xf32> to vector<8x8xf32>
    %69 = vector.extract_strided_slice %28 {offsets = [0, 80], sizes = [8, 8], strides = [1, 1]} : vector<8x96xf32> to vector<8x8xf32>
    %cst_29 = arith.constant dense<0.000000e+00> : vector<8x8xf32>
    %70 = tpu.matmul %67, %68, %cst_29 {dimension_numbers = #tpu.dot_dimension_numbers<[1], [1], [0], [0], [0, 0, 1, 0], [], []>} : vector<8x8xf32>, vector<8x8xf32>, vector<8x8xf32> -> vector<8x8xf32>
    %cst_30 = arith.constant dense<0xFF800000> : vector<8xf32>
    %71 = vector.multi_reduction <maximumf>, %70, %cst_30 [1] : vector<8x8xf32> to vector<8xf32>
    %72 = vector.shape_cast %71 : vector<8xf32> to vector<8x1xf32>
    %73 = vector.broadcast %72 : vector<8x1xf32> to vector<8x8xf32>
    %74 = arith.subf %70, %73 : vector<8x8xf32>
    %75 = math.exp %74 : vector<8x8xf32>
    %cst_31 = arith.constant dense<0.000000e+00> : vector<8xf32>
    %76 = vector.multi_reduction <add>, %75, %cst_31 [1] : vector<8x8xf32> to vector<8xf32>
    %77 = vector.shape_cast %76 : vector<8xf32> to vector<8x1xf32>
    %78 = tpu.reciprocal %77 {approx = true} : vector<8x1xf32> -> vector<8x1xf32>
    %79 = vector.broadcast %78 : vector<8x1xf32> to vector<8x8xf32>
    %80 = arith.mulf %75, %79 : vector<8x8xf32>
    %cst_32 = arith.constant dense<0.000000e+00> : vector<8x8xf32>
    %81 = tpu.matmul %80, %69, %cst_32 {dimension_numbers = #tpu.dot_dimension_numbers<[1], [0], [0], [1], [0, 0, 1, 1], [], []>} : vector<8x8xf32>, vector<8x8xf32>, vector<8x8xf32> -> vector<8x8xf32>
    %c0_33 = arith.constant 0 : index
    %c16 = arith.constant 16 : index
    %82 = vector.load %arg9[%c0_33, %c16] : memref<8x32xf32, #tpu.memory_space<vmem>>, vector<8x8xf32>
    tpu.vector_store %arg9[%c0_33, %c16], %81 {strides = array<i32>} : memref<8x32xf32, #tpu.memory_space<vmem>>, vector<8x8xf32>,
    %83 = vector.extract_strided_slice %28 {offsets = [0, 24], sizes = [8, 8], strides = [1, 1]} : vector<8x96xf32> to vector<8x8xf32>
    %cst_34 = arith.constant 0.353553385 : f32
    %84 = vector.broadcast %cst_34 : f32 to vector<8x8xf32>
    %85 = arith.mulf %83, %84 : vector<8x8xf32>
    %86 = vector.extract_strided_slice %28 {offsets = [0, 56], sizes = [8, 8], strides = [1, 1]} : vector<8x96xf32> to vector<8x8xf32>
    %87 = vector.extract_strided_slice %28 {offsets = [0, 88], sizes = [8, 8], strides = [1, 1]} : vector<8x96xf32> to vector<8x8xf32>
    %cst_35 = arith.constant dense<0.000000e+00> : vector<8x8xf32>
    %88 = tpu.matmul %85, %86, %cst_35 {dimension_numbers = #tpu.dot_dimension_numbers<[1], [1], [0], [0], [0, 0, 1, 0], [], []>} : vector<8x8xf32>, vector<8x8xf32>, vector<8x8xf32> -> vector<8x8xf32>
    %cst_36 = arith.constant dense<0xFF800000> : vector<8xf32>
    %89 = vector.multi_reduction <maximumf>, %88, %cst_36 [1] : vector<8x8xf32> to vector<8xf32>
    %90 = vector.shape_cast %89 : vector<8xf32> to vector<8x1xf32>
    %91 = vector.broadcast %90 : vector<8x1xf32> to vector<8x8xf32>
    %92 = arith.subf %88, %91 : vector<8x8xf32>
    %93 = math.exp %92 : vector<8x8xf32>
    %cst_37 = arith.constant dense<0.000000e+00> : vector<8xf32>
    %94 = vector.multi_reduction <add>, %93, %cst_37 [1] : vector<8x8xf32> to vector<8xf32>
    %95 = vector.shape_cast %94 : vector<8xf32> to vector<8x1xf32>
    %96 = tpu.reciprocal %95 {approx = true} : vector<8x1xf32> -> vector<8x1xf32>
    %97 = vector.broadcast %96 : vector<8x1xf32> to vector<8x8xf32>
    %98 = arith.mulf %93, %97 : vector<8x8xf32>
    %cst_38 = arith.constant dense<0.000000e+00> : vector<8x8xf32>
    %99 = tpu.matmul %98, %87, %cst_38 {dimension_numbers = #tpu.dot_dimension_numbers<[1], [0], [0], [1], [0, 0, 1, 1], [], []>} : vector<8x8xf32>, vector<8x8xf32>, vector<8x8xf32> -> vector<8x8xf32>
    %c0_39 = arith.constant 0 : index
    %c24 = arith.constant 24 : index
    %100 = vector.load %arg9[%c0_39, %c24] : memref<8x32xf32, #tpu.memory_space<vmem>>, vector<8x8xf32>
    tpu.vector_store %arg9[%c0_39, %c24], %99 {strides = array<i32>} : memref<8x32xf32, #tpu.memory_space<vmem>>, vector<8x8xf32>,
    %c0_40 = arith.constant 0 : index
    %c0_41 = arith.constant 0 : index
    %101 = vector.load %arg7[%c0_40, %c0_41] : memref<1x32xf32, #tpu.memory_space<vmem>>, vector<1x32xf32>
    %102 = vector.broadcast %101 : vector<1x32xf32> to vector<8x32xf32>
    %103 = arith.addf %23, %102 : vector<8x32xf32>
    %c0_42 = arith.constant 0 : index
    %c0_43 = arith.constant 0 : index
    %104 = vector.load %arg9[%c0_42, %c0_43] : memref<8x32xf32, #tpu.memory_space<vmem>>, vector<8x32xf32>
    %c0_44 = arith.constant 0 : index
    %c0_45 = arith.constant 0 : index
    %105 = vector.load %arg6[%c0_44, %c0_45] : memref<32x32xf32, #tpu.memory_space<vmem>>, vector<32x32xf32>
    %cst_46 = arith.constant dense<0.000000e+00> : vector<8x32xf32>
    %106 = tpu.matmul %104, %105, %cst_46 {dimension_numbers = #tpu.dot_dimension_numbers<[1], [0], [0], [1], [0, 0, 1, 1], [], []>} : vector<8x32xf32>, vector<32x32xf32>, vector<8x32xf32> -> vector<8x32xf32>
    %107 = arith.addf %103, %106 : vector<8x32xf32>
    %c0_47 = arith.constant 0 : index
    %c0_48 = arith.constant 0 : index
    %c0_49 = arith.constant 0 : index
    %108 = vector.load %arg8[%c0_47, %c0_48, %c0_49] : memref<1x8x32xf32, #tpu.memory_space<vmem>>, vector<1x8x32xf32>
    %109 = vector.shape_cast %108 : vector<1x8x32xf32> to vector<8x32xf32>
    %110 = vector.shape_cast %107 : vector<8x32xf32> to vector<1x8x32xf32>
    tpu.vector_store %arg8[%c0_47, %c0_48, %c0_49], %110 {strides = array<i32>} : memref<1x8x32xf32, #tpu.memory_space<vmem>>, vector<1x8x32xf32>,
    return
  }
  func.func @transform_0(%arg0: i32) -> (i32, i32, i32) {
    %c0_i32 = arith.constant 0 : i32
    %c0_i32_0 = arith.constant 0 : i32
    %c0_i32_1 = arith.constant 0 : i32
    return %arg0, %c0_i32, %c0_i32_0 : i32, i32, i32
  }
  func.func @transform_1(%arg0: i32) -> (i32, i32) {
    %c0_i32 = arith.constant 0 : i32
    %c0_i32_0 = arith.constant 0 : i32
    %c0_i32_1 = arith.constant 0 : i32
    return %c0_i32, %c0_i32_0 : i32, i32
  }
  func.func @transform_2(%arg0: i32) -> (i32, i32) {
    %c0_i32 = arith.constant 0 : i32
    %c0_i32_0 = arith.constant 0 : i32
    %c0_i32_1 = arith.constant 0 : i32
    return %c0_i32, %c0_i32_0 : i32, i32
  }
  func.func @transform_3(%arg0: i32) -> (i32, i32) {
    %c0_i32 = arith.constant 0 : i32
    %c0_i32_0 = arith.constant 0 : i32
    %c0_i32_1 = arith.constant 0 : i32
    return %c0_i32, %c0_i32_0 : i32, i32
  }
  func.func @transform_4(%arg0: i32) -> (i32, i32) {
    %c0_i32 = arith.constant 0 : i32
    %c0_i32_0 = arith.constant 0 : i32
    %c0_i32_1 = arith.constant 0 : i32
    return %c0_i32, %c0_i32_0 : i32, i32
  }
  func.func @transform_5(%arg0: i32) -> (i32, i32) {
    %c0_i32 = arith.constant 0 : i32
    %c0_i32_0 = arith.constant 0 : i32
    %c0_i32_1 = arith.constant 0 : i32
    return %c0_i32, %c0_i32_0 : i32, i32
  }
  func.func @transform_6(%arg0: i32) -> (i32, i32) {
    %c0_i32 = arith.constant 0 : i32
    %c0_i32_0 = arith.constant 0 : i32
    %c0_i32_1 = arith.constant 0 : i32
    return %c0_i32, %c0_i32_0 : i32, i32
  }
  func.func @transform_7(%arg0: i32) -> (i32, i32, i32) {
    %c0_i32 = arith.constant 0 : i32
    %c0_i32_0 = arith.constant 0 : i32
    %c0_i32_1 = arith.constant 0 : i32
    return %arg0, %c0_i32, %c0_i32_0 : i32, i32, i32
  }
}

</mosaic_0001>

<llo_original>
// kernel: tpu_custom_call.1
$region0: #{tpu_custom_call.1}
  #allocation0 [shape = 'u32[]', space=smem, size = 0x4, offset = 0x4, fixed_abs, tag = 'smem constant byte address 0x4 - core index']
  #allocation1 [shape = 'u32[72,128]{1,0:T(1,128)}', space=vmem, size = 0x9000, scoped, tag = 'internal scratch']
  #allocation2 [shape = 'f32[8,32]{1,0:T(8,128)}', space=vmem, size = 0x1000, scoped, tag = 'scratch operand']
  %s0 = inlined_call_operand.hbm [shape: f32[2,8,32], index: 0, kind: input, shape index: {}]
  %s1 = inlined_call_operand.hbm [shape: f32[1,32], index: 1, kind: input, shape index: {}]
  %s2 = inlined_call_operand.vmem [shape: f32[1,32], index: 2, kind: input, shape index: {}]
  %s3 = inlined_call_operand.hbm [shape: f32[32,96], index: 3, kind: input, shape index: {}]
  %s4 = inlined_call_operand.vmem [shape: f32[1,96], index: 4, kind: input, shape index: {}]
  %s5 = inlined_call_operand.hbm [shape: f32[32,32], index: 5, kind: input, shape index: {}]
  %s6 = inlined_call_operand.vmem [shape: f32[1,32], index: 6, kind: input, shape index: {}]
  %s7 = inlined_call_operand.hbm [shape: f32[2,8,32], index: 7, kind: output, shape index: {}]
  %s8 = sld [smem:[#allocation0]]
  $region77: #{tpu_custom_call.1} parent=0
    _
  %s10 = ssub.s32 1, %s8
  %s11 = scalar_select 0, %s10, %s8
  $region1: #{tpu_custom_call.1} parent=0
    #allocation3 [shape = 'u8[8192]{0}', space=vmem, size = 0x2000, scoped, tag = 'input window, operand 0']
    #allocation4 [shape = 's32[2]{0}', space=sflag, size = 0x8, scoped, tag = 'scoped memory for tpu_custom_call.1']
    #allocation5 [shape = 's32[2]{0}', space=sflag, size = 0x8, scoped, tag = 'scoped memory for tpu_custom_call.1']
    #allocation6 [shape = 'u8[512]{0}', space=vmem, size = 0x400, scoped, tag = 'input window, operand 1, single buffered']
    #allocation7 [shape = 's32[1]{0}', space=sflag, size = 0x4, scoped, tag = 'scoped memory for tpu_custom_call.1']
    #allocation8 [shape = 'u8[16384]{0}', space=vmem, size = 0x4000, scoped, tag = 'input window, operand 3, single buffered']
    #allocation9 [shape = 'u8[16384]{0}', space=vmem, size = 0x4000, scoped, tag = 'input window, operand 5, single buffered']
    #allocation10 [shape = 's32[1]{0}', space=sflag, size = 0x4, scoped, tag = 'scoped memory for tpu_custom_call.1']
    #allocation11 [shape = 'u8[8192]{0}', space=vmem, size = 0x2000, scoped, tag = 'output window, operand 0']
    %12 = vsyncpa [#allocation4], 0
    %s13 = scalar_lea.sflag [#allocation4], 1
    %14 = vsyncpa %s13, 0
    %15 = vsyncpa [#allocation7], 0
    %16 = vsyncpa [#allocation10], 0
    %17 = vsyncpa [#allocation5], 0
    %s18 = scalar_lea.sflag [#allocation5], 1
    %19 = vsyncpa %s18, 0
    loop: start=0, step=1, limit=4
    $region2: #{tpu_custom_call.1} parent=1 // loop_pre_header
      _
    $region3: #{tpu_custom_call.1} parent=1 // loop_header
      %s21 = sphi 0, %s25
      %p22 = scmp.ge.s32.totalorder %s21, 4
      %s31 = sphi 0, %s33
      %s34 = sphi 0, %s31
      %s35 = sphi 0, %s34
      %s51 = sphi 0, %s35
      %s55 = sphi 0, %s55
      %s57 = sphi 0, %s55
      %s58 = sphi 0, %s57
      %s72 = sphi 0, %s58
      %s76 = sphi 0, %s76
      %s78 = sphi 0, %s76
      %s79 = sphi 0, %s78
      %s93 = sphi 0, %s79
      %s97 = sphi 0, %s97
      %s99 = sphi 0, %s97
      %s100 = sphi 0, %s99
      %s114 = sphi 0, %s100
      %s118 = sphi 0, %s118
      %s120 = sphi 0, %s118
      %s121 = sphi 0, %s120
      %s135 = sphi 0, %s121
      %s139 = sphi 0, %s139
      %s141 = sphi 0, %s139
      %s142 = sphi 0, %s141
      %s156 = sphi 0, %s142
      %s160 = sphi 0, %s160
      %s162 = sphi 0, %s160
      %s163 = sphi 0, %s162
      %s177 = sphi 0, %s163
      %s183 = sphi 0, %s185
      %s186 = sphi 0, %s183
      %s187 = sphi 0, %s186
      %s203 = sphi 0, %s187
    $region4: #{tpu_custom_call.1} parent=1 // loop_header_branch
      %24 = sbr.rel (%p22) target = $region8
    $region5: #{tpu_custom_call.1} parent=1 // loop_body
      %s26 = ssub.s32 %s21, 1
      %s27 = ssub.s32 %s21, 2
      %s28 = sadd.s32 %s21, 1
      %s29 = ssub.s32 %s21, %s28
      %p30 = scmp.eq.s32.totalorder %s29, 0
      %s32 = sadd.s32 %s31, 1
      %s33 = scalar_select %p30, %s31, %s32
      %p36 = pneg %p30
      %p37 = scmp.eq.s32.totalorder %s21, 1
      %p38 = por %p36, %p37
      %p39 = scmp.ne.s32.totalorder %s31, %s34
      %p40 = scmp.eq.s32.totalorder %s21, 0
      %p41 = por %p39, %p40
      %p42 = scmp.ne.s32.totalorder %s31, %s34
      %p43 = scmp.eq.s32.totalorder %s26, 1
      %p44 = por %p42, %p43
      %p45 = scmp.ne.s32.totalorder %s34, %s35
      %p46 = scmp.eq.s32.totalorder %s26, 0
      %p47 = por %p45, %p46
      %p48 = scmp.ne.s32.totalorder %s34, %s35
      %p49 = scmp.eq.s32.totalorder %s27, 1
      %p50 = por %p48, %p49
      %p52 = scmp.ne.s32.totalorder %s35, %s51
      %p53 = scmp.eq.s32.totalorder %s27, 0
      %p54 = por %p52, %p53
      %s56 = sadd.s32 %s55, 1
      %p59 = scmp.eq.s32.totalorder %s21, 1
      %p60 = scmp.ne.s32.totalorder %s55, %s57
      %p61 = scmp.eq.s32.totalorder %s21, 0
      %p62 = por %p60, %p61
      %p63 = scmp.ne.s32.totalorder %s55, %s57
      %p64 = scmp.eq.s32.totalorder %s26, 1
      %p65 = por %p63, %p64
      %p66 = scmp.ne.s32.totalorder %s57, %s58
      %p67 = scmp.eq.s32.totalorder %s26, 0
      %p68 = por %p66, %p67
      %p69 = scmp.ne.s32.totalorder %s57, %s58
      %p70 = scmp.eq.s32.totalorder %s27, 1
      %p71 = por %p69, %p70
      %p73 = scmp.ne.s32.totalorder %s58, %s72
      %p74 = scmp.eq.s32.totalorder %s27, 0
      %p75 = por %p73, %p74
      %s77 = sadd.s32 %s76, 1
      %p80 = scmp.eq.s32.totalorder %s21, 1
      %p81 = scmp.ne.s32.totalorder %s76, %s78
      %p82 = scmp.eq.s32.totalorder %s21, 0
      %p83 = por %p81, %p82
      %p84 = scmp.ne.s32.totalorder %s76, %s78
      %p85 = scmp.eq.s32.totalorder %s26, 1
      %p86 = por %p84, %p85
      %p87 = scmp.ne.s32.totalorder %s78, %s79
      %p88 = scmp.eq.s32.totalorder %s26, 0
      %p89 = por %p87, %p88
      %p90 = scmp.ne.s32.totalorder %s78, %s79
      %p91 = scmp.eq.s32.totalorder %s27, 1
      %p92 = por %p90, %p91
      %p94 = scmp.ne.s32.totalorder %s79, %s93
      %p95 = scmp.eq.s32.totalorder %s27, 0
      %p96 = por %p94, %p95
      %s98 = sadd.s32 %s97, 1
      %p101 = scmp.eq.s32.totalorder %s21, 1
      %p102 = scmp.ne.s32.totalorder %s97, %s99
      %p103 = scmp.eq.s32.totalorder %s21, 0
      %p104 = por %p102, %p103
      %p105 = scmp.ne.s32.totalorder %s97, %s99
      %p106 = scmp.eq.s32.totalorder %s26, 1
      %p107 = por %p105, %p106
      %p108 = scmp.ne.s32.totalorder %s99, %s100
      %p109 = scmp.eq.s32.totalorder %s26, 0
      %p110 = por %p108, %p109
      %p111 = scmp.ne.s32.totalorder %s99, %s100
      %p112 = scmp.eq.s32.totalorder %s27, 1
      %p113 = por %p111, %p112
      %p115 = scmp.ne.s32.totalorder %s100, %s114
      %p116 = scmp.eq.s32.totalorder %s27, 0
      %p117 = por %p115, %p116
      %s119 = sadd.s32 %s118, 1
      %p122 = scmp.eq.s32.totalorder %s21, 1
      %p123 = scmp.ne.s32.totalorder %s118, %s120
      %p124 = scmp.eq.s32.totalorder %s21, 0
      %p125 = por %p123, %p124
      %p126 = scmp.ne.s32.totalorder %s118, %s120
      %p127 = scmp.eq.s32.totalorder %s26, 1
      %p128 = por %p126, %p127
      %p129 = scmp.ne.s32.totalorder %s120, %s121
      %p130 = scmp.eq.s32.totalorder %s26, 0
      %p131 = por %p129, %p130
      %p132 = scmp.ne.s32.totalorder %s120, %s121
      %p133 = scmp.eq.s32.totalorder %s27, 1
      %p134 = por %p132, %p133
      %p136 = scmp.ne.s32.totalorder %s121, %s135
      %p137 = scmp.eq.s32.totalorder %s27, 0
      %p138 = por %p136, %p137
      %s140 = sadd.s32 %s139, 1
      %p143 = scmp.eq.s32.totalorder %s21, 1
      %p144 = scmp.ne.s32.totalorder %s139, %s141
      %p145 = scmp.eq.s32.totalorder %s21, 0
      %p146 = por %p144, %p145
      %p147 = scmp.ne.s32.totalorder %s139, %s141
      %p148 = scmp.eq.s32.totalorder %s26, 1
      %p149 = por %p147, %p148
      %p150 = scmp.ne.s32.totalorder %s141, %s142
      %p151 = scmp.eq.s32.totalorder %s26, 0
      %p152 = por %p150, %p151
      %p153 = scmp.ne.s32.totalorder %s141, %s142
      %p154 = scmp.eq.s32.totalorder %s27, 1
      %p155 = por %p153, %p154
      %p157 = scmp.ne.s32.totalorder %s142, %s156
      %p158 = scmp.eq.s32.totalorder %s27, 0
      %p159 = por %p157, %p158
      %s161 = sadd.s32 %s160, 1
      %p164 = scmp.eq.s32.totalorder %s21, 1
      %p165 = scmp.ne.s32.totalorder %s160, %s162
      %p166 = scmp.eq.s32.totalorder %s21, 0
      %p167 = por %p165, %p166
      %p168 = scmp.ne.s32.totalorder %s160, %s162
      %p169 = scmp.eq.s32.totalorder %s26, 1
      %p170 = por %p168, %p169
      %p171 = scmp.ne.s32.totalorder %s162, %s163
      %p172 = scmp.eq.s32.totalorder %s26, 0
      %p173 = por %p171, %p172
      %p174 = scmp.ne.s32.totalorder %s162, %s163
      %p175 = scmp.eq.s32.totalorder %s27, 1
      %p176 = por %p174, %p175
      %p178 = scmp.ne.s32.totalorder %s163, %s177
      %p179 = scmp.eq.s32.totalorder %s27, 0
      %p180 = por %p178, %p179
      %s181 = ssub.s32 %s21, %s28
      %p182 = scmp.eq.s32.totalorder %s181, 0
      %s184 = sadd.s32 %s183, 1
      %s185 = scalar_select %p182, %s183, %s184
      %p188 = pneg %p182
      %p189 = scmp.eq.s32.totalorder %s21, 1
      %p190 = por %p188, %p189
      %p191 = scmp.ne.s32.totalorder %s183, %s186
      %p192 = scmp.eq.s32.totalorder %s21, 0
      %p193 = por %p191, %p192
      %p194 = scmp.ne.s32.totalorder %s183, %s186
      %p195 = scmp.eq.s32.totalorder %s26, 1
      %p196 = por %p194, %p195
      %p197 = scmp.ne.s32.totalorder %s186, %s187
      %p198 = scmp.eq.s32.totalorder %s26, 0
      %p199 = por %p197, %p198
      %p200 = scmp.ne.s32.totalorder %s186, %s187
      %p201 = scmp.eq.s32.totalorder %s27, 1
      %p202 = por %p200, %p201
      %p204 = scmp.ne.s32.totalorder %s187, %s203
      %p205 = scmp.eq.s32.totalorder %s27, 0
      %p206 = por %p204, %p205
      %p207 = scmp.le.s32.totalorder 1, %s21
      %p208 = scmp.lt.s32.totalorder %s21, 3
      %p209 = pnand %p207, %p208
      %p210 = pneg %p209
      // Predicated region
      $region9: #{tpu_custom_call.1} parent=5 // pred_check
        _
      $region10: #{tpu_custom_call.1} parent=5 // pred_check_branch
        %212 = sbr.rel (%p209) target = $region12
      $region11: #{tpu_custom_call.1} parent=5 // pred_region
        %s213 = ssub.s32 %s21, 1
        // Predicated region
        $region13: #{tpu_custom_call.1} parent=11 // pred_check
          %p214 = pneg %p68
        $region14: #{tpu_custom_call.1} parent=11 // pred_check_branch
          %216 = sbr.rel (%p214) target = $region16
        $region15: #{tpu_custom_call.1} parent=11 // pred_region
          %218 = vsyncadd [#allocation7], 0
          %s220 = sshll.u32 %s1, 4
          %s221 = int_to_ptr.hbm [resolvable:$true] %s220
          %s222 = sshll.u32 [#allocation6], 4
          %s223 = int_to_ptr.vmem [resolvable:$true] %s222
          %225 = dma.hbm_to_vmem [thread:$0]  %s221, 16, %s223, [#allocation7]
        $region16: #{tpu_custom_call.1} parent=11 // pred_fallthru
          _
        // Predicated region
        $region17: #{tpu_custom_call.1} parent=11 // pred_check
          %p226 = pneg %p89
        $region18: #{tpu_custom_call.1} parent=11 // pred_check_branch
          %228 = sbr.rel (%p226) target = $region20
        $region19: #{tpu_custom_call.1} parent=11 // pred_region
          _
        $region20: #{tpu_custom_call.1} parent=11 // pred_fallthru
          _
        // Predicated region
        $region21: #{tpu_custom_call.1} parent=11 // pred_check
          %p229 = pneg %p110
        $region22: #{tpu_custom_call.1} parent=11 // pred_check_branch
          %231 = sbr.rel (%p229) target = $region24
        $region23: #{tpu_custom_call.1} parent=11 // pred_region
          %233 = vsyncadd [#allocation7], 0
          %s234 = sshll.u32 %s3, 4
          %s235 = int_to_ptr.hbm [resolvable:$true] %s234
          %s236 = sshll.u32 [#allocation8], 4
          %s237 = int_to_ptr.vmem [resolvable:$true] %s236
          %242 = dma.hbm_to_vmem [thread:$0]  %s235, 512, %s237, [#allocation7], 128, 128, 8
        $region24: #{tpu_custom_call.1} parent=11 // pred_fallthru
          _
        // Predicated region
        $region25: #{tpu_custom_call.1} parent=11 // pred_check
          %p243 = pneg %p131
        $region26: #{tpu_custom_call.1} parent=11 // pred_check_branch
          %245 = sbr.rel (%p243) target = $region28
        $region27: #{tpu_custom_call.1} parent=11 // pred_region
          _
        $region28: #{tpu_custom_call.1} parent=11 // pred_fallthru
          _
        // Predicated region
        $region29: #{tpu_custom_call.1} parent=11 // pred_check
          %p246 = pneg %p152
        $region30: #{tpu_custom_call.1} parent=11 // pred_check_branch
          %248 = sbr.rel (%p246) target = $region32
        $region31: #{tpu_custom_call.1} parent=11 // pred_region
          %250 = vsyncadd [#allocation10], 0
          %s251 = sshll.u32 %s5, 4
          %s252 = int_to_ptr.hbm [resolvable:$true] %s251
          %s253 = sshll.u32 [#allocation9], 4
          %s254 = int_to_ptr.vmem [resolvable:$true] %s253
          %259 = dma.hbm_to_vmem [thread:$0]  %s252, 512, %s254, [#allocation10], 128, 128, 8
        $region32: #{tpu_custom_call.1} parent=11 // pred_fallthru
          _
        // Predicated region
        $region33: #{tpu_custom_call.1} parent=11 // pred_check
          %p260 = pneg %p173
        $region34: #{tpu_custom_call.1} parent=11 // pred_check_branch
          %262 = sbr.rel (%p260) target = $region36
        $region35: #{tpu_custom_call.1} parent=11 // pred_region
          _
        $region36: #{tpu_custom_call.1} parent=11 // pred_fallthru
          _
      $region12: #{tpu_custom_call.1} parent=5 // pred_fallthru
        _
      %p263 = scmp.lt.s32.totalorder %s21, 2
      // Predicated region
      $region37: #{tpu_custom_call.1} parent=5 // pred_check
        %p264 = pneg %p263
      $region38: #{tpu_custom_call.1} parent=5 // pred_check_branch
        %266 = sbr.rel (%p264) target = $region40
      $region39: #{tpu_custom_call.1} parent=5 // pred_region
        // Predicated region
        $region41: #{tpu_custom_call.1} parent=39 // pred_check
          %p267 = pneg %p41
        $region42: #{tpu_custom_call.1} parent=39 // pred_check_branch
          %269 = sbr.rel (%p267) target = $region44
        $region43: #{tpu_custom_call.1} parent=39 // pred_region
          %s270 = sand.u32 %s31, 1
          %s271 = scalar_lea.sflag [#allocation4], %s270
          %s272 = sand.u32 %s31, 1
          %s273 = smul.addr %s272, 8
          %s274 = scalar_lea.vmem [#allocation3], %s273
          %276 = vsyncadd %s271, 0
          %s277 = smul.addr %s21, 8
          %s278 = scalar_lea.hbm %s0, %s277
          %s280 = sshll.u32 %s278, 4
          %s281 = int_to_ptr.hbm [resolvable:$true] %s280
          %s282 = sshll.u32 %s274, 4
          %s283 = int_to_ptr.vmem [resolvable:$true] %s282
          %285 = dma.hbm_to_vmem [thread:$0]  %s281, 128, %s283, %s271
        $region44: #{tpu_custom_call.1} parent=39 // pred_fallthru
          _
      $region40: #{tpu_custom_call.1} parent=5 // pred_fallthru
        _
      %p286 = scmp.le.s32.totalorder 1, %s21
      %p287 = scmp.lt.s32.totalorder %s21, 3
      %p288 = pnand %p286, %p287
      %p289 = pneg %p288
      // Predicated region
      $region45: #{tpu_custom_call.1} parent=5 // pred_check
        _
      $region46: #{tpu_custom_call.1} parent=5 // pred_check_branch
        %291 = sbr.rel (%p288) target = $region48
      $region47: #{tpu_custom_call.1} parent=5 // pred_region
        %s292 = ssub.s32 %s21, 1
        %s293 = sand.u32 %s34, 1
        %s294 = scalar_lea.sflag [#allocation4], %s293
        %s295 = sand.u32 %s34, 1
        %s296 = smul.addr %s295, 8
        %s297 = scalar_lea.vmem [#allocation3], %s296
        // Predicated region
        $region49: #{tpu_custom_call.1} parent=47 // pred_check
          %p298 = pneg %p47
        $region50: #{tpu_custom_call.1} parent=47 // pred_check_branch
          %300 = sbr.rel (%p298) target = $region52
        $region51: #{tpu_custom_call.1} parent=47 // pred_region
          %302 = dma.done %s294, 128
        $region52: #{tpu_custom_call.1} parent=47 // pred_fallthru
          _
        // Predicated region
        $region53: #{tpu_custom_call.1} parent=47 // pred_check
          %p303 = pneg %p68
        $region54: #{tpu_custom_call.1} parent=47 // pred_check_branch
          %305 = sbr.rel (%p303) target = $region56
        $region55: #{tpu_custom_call.1} parent=47 // pred_region
          %307 = dma.done [#allocation7], 16
        $region56: #{tpu_custom_call.1} parent=47 // pred_fallthru
          _
        // Predicated region
        $region57: #{tpu_custom_call.1} parent=47 // pred_check
          %p308 = pneg %p110
        $region58: #{tpu_custom_call.1} parent=47 // pred_check_branch
          %310 = sbr.rel (%p308) target = $region60
        $region59: #{tpu_custom_call.1} parent=47 // pred_region
          %312 = dma.done [#allocation7], 512
        $region60: #{tpu_custom_call.1} parent=47 // pred_fallthru
          _
        // Predicated region
        $region61: #{tpu_custom_call.1} parent=47 // pred_check
          %p313 = pneg %p152
        $region62: #{tpu_custom_call.1} parent=47 // pred_check_branch
          %315 = sbr.rel (%p313) target = $region64
        $region63: #{tpu_custom_call.1} parent=47 // pred_region
          %317 = dma.done [#allocation10], 512
        $region64: #{tpu_custom_call.1} parent=47 // pred_fallthru
          _
        %s318 = sand.u32 %s34, 1
        %s319 = scalar_lea.sflag [#allocation4], %s318
        %s320 = sand.u32 %s34, 1
        %s321 = smul.addr %s320, 8
        %s322 = scalar_lea.vmem [#allocation3], %s321
        %p323 = pneg %p47
        %p324 = pneg %p44
        %p325 = pneg %p68
        %p326 = pneg %p65
        %p327 = pneg %p89
        %p328 = pneg %p86
        %p329 = pneg %p110
        %p330 = pneg %p107
        %p331 = pneg %p131
        %p332 = pneg %p128
        %p333 = pneg %p152
        %p334 = pneg %p149
        %p335 = pneg %p173
        %p336 = pneg %p170
        %p337 = pneg %p199
        %p338 = pneg %p196
        %s339 = sand.u32 %s186, 1
        %s340 = scalar_lea.sflag [#allocation5], %s339
        %s341 = sand.u32 %s186, 1
        %s342 = smul.addr %s341, 8
        %s343 = scalar_lea.vmem [#allocation11], %s342
        %v344 = vld [vmem:[%s297] sm:$0xff]
        %vm345 = vcmask 261120
        %v346 = vsel %vm345, %v344, 0.0
        %347 = vadd.xlane.f32.xlu0 %v346
        %v348 = vpop.xlane.xlu0 %347
        %v349 = vrcp.pop 32.0
        %v350 = vmul.f32 32.0, %v349
        %v351 = vsub.f32 1.0, %v350
        %v352 = vmul.f32 %v349, %v351
        %v353 = vadd.f32 %v349, %v352
        %vm354 = vweird.f32 %v349
        %v355 = vsel %vm354, %v349, %v353
        %v356 = vmul.f32 %v348, %v355
        %v357 = vsub.f32 %v344, %v356
        %v358 = vmul.f32 %v357, %v357
        %v359 = vsel %vm345, %v358, 0.0
        %360 = vadd.xlane.f32.xlu0 %v359
        %v361 = vpop.xlane.xlu0 %360
        %v362 = vmul.f32 %v361, %v355
        %v363 = vadd.f32 %v362, 1e-05
        %v364 = vrsqrt.pop %v363
        %v365 = vmul.f32 %v364, %v363
        %v366 = vmul.f32 %v365, %v364
        %v367 = vmul.f32 0.5, %v366
        %v368 = vsub.f32 1.5, %v367
        %v369 = vmul.f32 %v364, %v368
        %vm370 = vweird.f32 %v363
        %vm371 = vweird.f32 %v364
        %vm372 = vmor %vm370, %vm371
        %v373 = vsel %vm372, %v364, %v369
        %v374 = vmul.f32 %v357, %v373
        %v375 = vld [vmem:[#allocation6] sm:$0x1]
        %v377 = vperm.slane %v375, 0
        %v379 = vmul.f32 %v374, %v377
        %v380 = vld [vmem:[%s2] sm:$0x1]
        %v382 = vperm.slane %v380, 0
        %v384 = vadd.f32 %v379, %v382
        %v385 = vld [vmem:[#allocation8] sm:$0xff]
        %v386 = vld [vmem:[#allocation8 + $0x8] sm:$0xff]
        %v387 = vld [vmem:[#allocation8 + $0x10] sm:$0xff]
        %v388 = vld [vmem:[#allocation8 + $0x18] sm:$0xff]
        %v389 = vld [vmem:[%s4] sm:$0x1]
        %v391 = vperm.slane %v389, 0
        %v394 = vsel %vm345, %v384, 0
        %396 = vmatpush.msra.mxu0 0.0
        %397 = vmatpush.msra.mxu0 0.0
        %398 = vmatpush.msra.mxu0 0.0
        %399 = vmatpush.msra.mxu0 0.0
        %400 = vmatpush.msra.mxu0 0.0
        %401 = vmatpush.msra.mxu0 0.0
        %402 = vmatpush.msra.mxu0 0.0
        %403 = vmatpush.msra.mxu0 0.0
        %404 = vmatpush.msra.mxu0 0.0
        %405 = vmatpush.msra.mxu0 0.0
        %406 = vmatpush.msra.mxu0 0.0
        %407 = vmatpush.msra.mxu0 0.0
        %408 = vmatpush.msra.mxu0 %v388
        %409 = vmatpush.msra.mxu0 %v387
        %410 = vmatpush.msra.mxu0 %v386
        %411 = vmatpush.msra.mxu0 %v385
        %412 = vmatmul.f32.gmra.mxu0 %v394
        %v413 = vpop.f32.mrf.mxu0
        %v414 = vadd.f32 %v391, %v413
        %415 = vdwg.mxu0
        %v416 = vmul.f32 %v414, 0.35355338
        %418 = vrot.lane.b32.xlu0 %v414, 96
        %v419 = vpop.permute.xlu0 %418
        %vm420 = vcmask 64512
        %v422 = vsel %vm420, %v416, 0
        %v424 = vsel %vm420, %v419, 0
        %426 = vmatpush.xpose.msra.mxu0 0.0
        %427 = vmatpush.xpose.msra.mxu0 0.0
        %428 = vmatpush.xpose.msra.mxu0 0.0
        %429 = vmatpush.xpose.msra.mxu0 0.0
        %430 = vmatpush.xpose.msra.mxu0 0.0
        %431 = vmatpush.xpose.msra.mxu0 0.0
        %432 = vmatpush.xpose.msra.mxu0 0.0
        %433 = vmatpush.xpose.msra.mxu0 0.0
        %434 = vmatpush.xpose.msra.mxu0 0.0
        %435 = vmatpush.xpose.msra.mxu0 0.0
        %436 = vmatpush.xpose.msra.mxu0 0.0
        %437 = vmatpush.xpose.msra.mxu0 0.0
        %438 = vmatpush.xpose.msra.mxu0 0.0
        %439 = vmatpush.xpose.msra.mxu0 0.0
        %440 = vmatpush.xpose.msra.mxu0 0.0
        %441 = vmatpush.xpose.msra.mxu0 %v424
        %442 = vmatmul.f32.gmra.mxu0 %v422
        %v443 = vpop.f32.mrf.mxu0
        %v444 = vadd.f32 0.0, %v443
        %445 = vdwg.mxu0
        %v446 = vsel %vm420, %v444, -inf
        %447 = vmax.xlane.f32.xlu0 %v446
        %v448 = vpop.xlane.xlu0 %447
        %v449 = vsub.f32 %v444, %v448
        %v450 = vmul.f32 %v449, 1.442695
        %v451 = vpow.pop %v450
        %v452 = vsel %vm420, %v451, 0.0
        %453 = vadd.xlane.f32.xlu0 %v452
        %v454 = vpop.xlane.xlu0 %453
        %v455 = vrcp.pop %v454
        %v456 = vmul.f32 %v451, %v455
        %457 = vrot.lane.b32.xlu0 %v414, 64
        %v458 = vpop.permute.xlu0 %457
        %v461 = vsel %vm420, %v456, 0
        %463 = vmatpush.msra.mxu0 0.0
        %464 = vmatpush.msra.mxu0 0.0
        %465 = vmatpush.msra.mxu0 0.0
        %466 = vmatpush.msra.mxu0 0.0
        %467 = vmatpush.msra.mxu0 0.0
        %468 = vmatpush.msra.mxu0 0.0
        %469 = vmatpush.msra.mxu0 0.0
        %470 = vmatpush.msra.mxu0 0.0
        %471 = vmatpush.msra.mxu0 0.0
        %472 = vmatpush.msra.mxu0 0.0
        %473 = vmatpush.msra.mxu0 0.0
        %474 = vmatpush.msra.mxu0 0.0
        %475 = vmatpush.msra.mxu0 0.0
        %476 = vmatpush.msra.mxu0 0.0
        %477 = vmatpush.msra.mxu0 0.0
        %478 = vmatpush.msra.mxu0 %v458
        %479 = vmatmul.f32.gmra.mxu0 %v461
        %v480 = vpop.f32.mrf.mxu0
        %v481 = vadd.f32 0.0, %v480
        %482 = vdwg.mxu0
        %483 = vst.msk [vmem:[#allocation2] sm:$0xff] %vm420, %v481
        %484 = vrot.lane.b32.xlu0 %v416, 120
        %v485 = vpop.permute.xlu0 %484
        %486 = vrot.lane.b32.xlu0 %v414, 88
        %v487 = vpop.permute.xlu0 %486
        %v488 = vsel %vm420, %v485, 0
        %v490 = vsel %vm420, %v487, 0
        %492 = vmatpush.xpose.msra.mxu0 0.0
        %493 = vmatpush.xpose.msra.mxu0 0.0
        %494 = vmatpush.xpose.msra.mxu0 0.0
        %495 = vmatpush.xpose.msra.mxu0 0.0
        %496 = vmatpush.xpose.msra.mxu0 0.0
        %497 = vmatpush.xpose.msra.mxu0 0.0
        %498 = vmatpush.xpose.msra.mxu0 0.0
        %499 = vmatpush.xpose.msra.mxu0 0.0
        %500 = vmatpush.xpose.msra.mxu0 0.0
        %501 = vmatpush.xpose.msra.mxu0 0.0
        %502 = vmatpush.xpose.msra.mxu0 0.0
        %503 = vmatpush.xpose.msra.mxu0 0.0
        %504 = vmatpush.xpose.msra.mxu0 0.0
        %505 = vmatpush.xpose.msra.mxu0 0.0
        %506 = vmatpush.xpose.msra.mxu0 0.0
        %507 = vmatpush.xpose.msra.mxu0 %v490
        %508 = vmatmul.f32.gmra.mxu0 %v488
        %v509 = vpop.f32.mrf.mxu0
        %v510 = vadd.f32 0.0, %v509
        %511 = vdwg.mxu0
        %v512 = vsel %vm420, %v510, -inf
        %513 = vmax.xlane.f32.xlu0 %v512
        %v514 = vpop.xlane.xlu0 %513
        %v515 = vsub.f32 %v510, %v514
        %v516 = vmul.f32 %v515, 1.442695
        %v517 = vpow.pop %v516
        %v518 = vsel %vm420, %v517, 0.0
        %519 = vadd.xlane.f32.xlu0 %v518
        %v520 = vpop.xlane.xlu0 %519
        %v521 = vrcp.pop %v520
        %v522 = vmul.f32 %v517, %v521
        %523 = vrot.lane.b32.xlu0 %v414, 56
        %v524 = vpop.permute.xlu0 %523
        %v527 = vsel %vm420, %v522, 0
        %529 = vmatpush.msra.mxu0 0.0
        %530 = vmatpush.msra.mxu0 0.0
        %531 = vmatpush.msra.mxu0 0.0
        %532 = vmatpush.msra.mxu0 0.0
        %533 = vmatpush.msra.mxu0 0.0
        %534 = vmatpush.msra.mxu0 0.0
        %535 = vmatpush.msra.mxu0 0.0
        %536 = vmatpush.msra.mxu0 0.0
        %537 = vmatpush.msra.mxu0 0.0
        %538 = vmatpush.msra.mxu0 0.0
        %539 = vmatpush.msra.mxu0 0.0
        %540 = vmatpush.msra.mxu0 0.0
        %541 = vmatpush.msra.mxu0 0.0
        %542 = vmatpush.msra.mxu0 0.0
        %543 = vmatpush.msra.mxu0 0.0
        %544 = vmatpush.msra.mxu0 %v524
        %545 = vmatmul.f32.gmra.mxu0 %v527
        %v546 = vpop.f32.mrf.mxu0
        %v547 = vadd.f32 0.0, %v546
        %548 = vdwg.mxu0
        %550 = vrot.lane.b32.xlu0 %v547, 8
        %v551 = vpop.permute.xlu0 %550
        %vm553 = vcmask 130112
        %554 = vst.msk [vmem:[#allocation2] sm:$0xff] %vm553, %v551
        %555 = vrot.lane.b32.xlu0 %v416, 112
        %v556 = vpop.permute.xlu0 %555
        %557 = vrot.lane.b32.xlu0 %v414, 80
        %v558 = vpop.permute.xlu0 %557
        %v559 = vsel %vm420, %v556, 0
        %v561 = vsel %vm420, %v558, 0
        %563 = vmatpush.xpose.msra.mxu0 0.0
        %564 = vmatpush.xpose.msra.mxu0 0.0
        %565 = vmatpush.xpose.msra.mxu0 0.0
        %566 = vmatpush.xpose.msra.mxu0 0.0
        %567 = vmatpush.xpose.msra.mxu0 0.0
        %568 = vmatpush.xpose.msra.mxu0 0.0
        %569 = vmatpush.xpose.msra.mxu0 0.0
        %570 = vmatpush.xpose.msra.mxu0 0.0
        %571 = vmatpush.xpose.msra.mxu0 0.0
        %572 = vmatpush.xpose.msra.mxu0 0.0
        %573 = vmatpush.xpose.msra.mxu0 0.0
        %574 = vmatpush.xpose.msra.mxu0 0.0
        %575 = vmatpush.xpose.msra.mxu0 0.0
        %576 = vmatpush.xpose.msra.mxu0 0.0
        %577 = vmatpush.xpose.msra.mxu0 0.0
        %578 = vmatpush.xpose.msra.mxu0 %v561
        %579 = vmatmul.f32.gmra.mxu0 %v559
        %v580 = vpop.f32.mrf.mxu0
        %v581 = vadd.f32 0.0, %v580
        %582 = vdwg.mxu0
        %v583 = vsel %vm420, %v581, -inf
        %584 = vmax.xlane.f32.xlu0 %v583
        %v585 = vpop.xlane.xlu0 %584
        %v586 = vsub.f32 %v581, %v585
        %v587 = vmul.f32 %v586, 1.442695
        %v588 = vpow.pop %v587
        %v589 = vsel %vm420, %v588, 0.0
        %590 = vadd.xlane.f32.xlu0 %v589
        %v591 = vpop.xlane.xlu0 %590
        %v592 = vrcp.pop %v591
        %v593 = vmul.f32 %v588, %v592
        %594 = vrot.lane.b32.xlu0 %v414, 48
        %v595 = vpop.permute.xlu0 %594
        %v598 = vsel %vm420, %v593, 0
        %600 = vmatpush.msra.mxu0 0.0
        %601 = vmatpush.msra.mxu0 0.0
        %602 = vmatpush.msra.mxu0 0.0
        %603 = vmatpush.msra.mxu0 0.0
        %604 = vmatpush.msra.mxu0 0.0
        %605 = vmatpush.msra.mxu0 0.0
        %606 = vmatpush.msra.mxu0 0.0
        %607 = vmatpush.msra.mxu0 0.0
        %608 = vmatpush.msra.mxu0 0.0
        %609 = vmatpush.msra.mxu0 0.0
        %610 = vmatpush.msra.mxu0 0.0
        %611 = vmatpush.msra.mxu0 0.0
        %612 = vmatpush.msra.mxu0 0.0
        %613 = vmatpush.msra.mxu0 0.0
        %614 = vmatpush.msra.mxu0 0.0
        %615 = vmatpush.msra.mxu0 %v595
        %616 = vmatmul.f32.gmra.mxu0 %v598
        %v617 = vpop.f32.mrf.mxu0
        %v618 = vadd.f32 0.0, %v617
        %619 = vdwg.mxu0
        %621 = vrot.lane.b32.xlu0 %v618, 16
        %v622 = vpop.permute.xlu0 %621
        %vm624 = vcmask 195712
        %625 = vst.msk [vmem:[#allocation2] sm:$0xff] %vm624, %v622
        %626 = vrot.lane.b32.xlu0 %v416, 104
        %v627 = vpop.permute.xlu0 %626
        %628 = vrot.lane.b32.xlu0 %v414, 72
        %v629 = vpop.permute.xlu0 %628
        %v630 = vsel %vm420, %v627, 0
        %v632 = vsel %vm420, %v629, 0
        %634 = vmatpush.xpose.msra.mxu0 0.0
        %635 = vmatpush.xpose.msra.mxu0 0.0
        %636 = vmatpush.xpose.msra.mxu0 0.0
        %637 = vmatpush.xpose.msra.mxu0 0.0
        %638 = vmatpush.xpose.msra.mxu0 0.0
        %639 = vmatpush.xpose.msra.mxu0 0.0
        %640 = vmatpush.xpose.msra.mxu0 0.0
        %641 = vmatpush.xpose.msra.mxu0 0.0
        %642 = vmatpush.xpose.msra.mxu0 0.0
        %643 = vmatpush.xpose.msra.mxu0 0.0
        %644 = vmatpush.xpose.msra.mxu0 0.0
        %645 = vmatpush.xpose.msra.mxu0 0.0
        %646 = vmatpush.xpose.msra.mxu0 0.0
        %647 = vmatpush.xpose.msra.mxu0 0.0
        %648 = vmatpush.xpose.msra.mxu0 0.0
        %649 = vmatpush.xpose.msra.mxu0 %v632
        %650 = vmatmul.f32.gmra.mxu0 %v630
        %v651 = vpop.f32.mrf.mxu0
        %v652 = vadd.f32 0.0, %v651
        %653 = vdwg.mxu0
        %v654 = vsel %vm420, %v652, -inf
        %655 = vmax.xlane.f32.xlu0 %v654
        %v656 = vpop.xlane.xlu0 %655
        %v657 = vsub.f32 %v652, %v656
        %v658 = vmul.f32 %v657, 1.442695
        %v659 = vpow.pop %v658
        %v660 = vsel %vm420, %v659, 0.0
        %661 = vadd.xlane.f32.xlu0 %v660
        %v662 = vpop.xlane.xlu0 %661
        %v663 = vrcp.pop %v662
        %v664 = vmul.f32 %v659, %v663
        %665 = vrot.lane.b32.xlu0 %v414, 40
        %v666 = vpop.permute.xlu0 %665
        %v669 = vsel %vm420, %v664, 0
        %671 = vmatpush.msra.mxu0 0.0
        %672 = vmatpush.msra.mxu0 0.0
        %673 = vmatpush.msra.mxu0 0.0
        %674 = vmatpush.msra.mxu0 0.0
        %675 = vmatpush.msra.mxu0 0.0
        %676 = vmatpush.msra.mxu0 0.0
        %677 = vmatpush.msra.mxu0 0.0
        %678 = vmatpush.msra.mxu0 0.0
        %679 = vmatpush.msra.mxu0 0.0
        %680 = vmatpush.msra.mxu0 0.0
        %681 = vmatpush.msra.mxu0 0.0
        %682 = vmatpush.msra.mxu0 0.0
        %683 = vmatpush.msra.mxu0 0.0
        %684 = vmatpush.msra.mxu0 0.0
        %685 = vmatpush.msra.mxu0 0.0
        %686 = vmatpush.msra.mxu0 %v666
        %687 = vmatmul.f32.gmra.mxu0 %v669
        %v688 = vpop.f32.mrf.mxu0
        %v689 = vadd.f32 0.0, %v688
        %690 = vdwg.mxu0
        %692 = vrot.lane.b32.xlu0 %v689, 24
        %v693 = vpop.permute.xlu0 %692
        %vm695 = vcmask 261312
        %696 = vst.msk [vmem:[#allocation2] sm:$0xff] %vm695, %v693
        %v697 = vld [vmem:[%s6] sm:$0x1]
        %v699 = vperm.slane %v697, 0
        %v701 = vadd.f32 %v384, %v699
        %v702 = vld [vmem:[#allocation2] sm:$0xff]
        %v703 = vld [vmem:[#allocation9] sm:$0xff]
        %v704 = vld [vmem:[#allocation9 + $0x8] sm:$0xff]
        %v705 = vld [vmem:[#allocation9 + $0x10] sm:$0xff]
        %v706 = vld [vmem:[#allocation9 + $0x18] sm:$0xff]
        %v708 = vsel %vm345, %v702, 0
        %710 = vmatpush.msra.mxu0 0.0
        %711 = vmatpush.msra.mxu0 0.0
        %712 = vmatpush.msra.mxu0 0.0
        %713 = vmatpush.msra.mxu0 0.0
        %714 = vmatpush.msra.mxu0 0.0
        %715 = vmatpush.msra.mxu0 0.0
        %716 = vmatpush.msra.mxu0 0.0
        %717 = vmatpush.msra.mxu0 0.0
        %718 = vmatpush.msra.mxu0 0.0
        %719 = vmatpush.msra.mxu0 0.0
        %720 = vmatpush.msra.mxu0 0.0
        %721 = vmatpush.msra.mxu0 0.0
        %722 = vmatpush.msra.mxu0 %v706
        %723 = vmatpush.msra.mxu0 %v705
        %724 = vmatpush.msra.mxu0 %v704
        %725 = vmatpush.msra.mxu0 %v703
        %726 = vmatmul.f32.gmra.mxu0 %v708
        %v727 = vpop.f32.mrf.mxu0
        %v728 = vadd.f32 0.0, %v727
        %729 = vdwg.mxu0
        %v730 = vadd.f32 %v701, %v728
        %731 = vst.msk [vmem:[%s343] sm:$0xff] %vm345, %v730
        %s732 = sand.u32 %s186, 1
        %s733 = scalar_lea.sflag [#allocation5], %s732
        %s734 = sand.u32 %s186, 1
        %s735 = smul.addr %s734, 8
        %s736 = scalar_lea.vmem [#allocation11], %s735
        // Predicated region
        $region65: #{tpu_custom_call.1} parent=47 // pred_check
          %p737 = pneg %p196
        $region66: #{tpu_custom_call.1} parent=47 // pred_check_branch
          %739 = sbr.rel (%p737) target = $region68
        $region67: #{tpu_custom_call.1} parent=47 // pred_region
          %741 = vsyncadd %s733, 0
          %s742 = smul.addr %s26, 8
          %s743 = scalar_lea.hbm %s7, %s742
          %s745 = sshll.u32 %s736, 4
          %s746 = int_to_ptr.vmem [resolvable:$true] %s745
          %s747 = sshll.u32 %s743, 4
          %s748 = int_to_ptr.hbm [resolvable:$true] %s747
          %750 = dma.vmem_to_hbm [thread:$0]  %s746, 128, %s748, %s733
        $region68: #{tpu_custom_call.1} parent=47 // pred_fallthru
          _
      $region48: #{tpu_custom_call.1} parent=5 // pred_fallthru
        _
      %p751 = scmp.le.s32.totalorder 2, %s21
      // Predicated region
      $region69: #{tpu_custom_call.1} parent=5 // pred_check
        %p752 = pneg %p751
      $region70: #{tpu_custom_call.1} parent=5 // pred_check_branch
        %754 = sbr.rel (%p752) target = $region72
      $region71: #{tpu_custom_call.1} parent=5 // pred_region
        %s755 = ssub.s32 %s21, 2
        // Predicated region
        $region73: #{tpu_custom_call.1} parent=71 // pred_check
          %p756 = pneg %p202
        $region74: #{tpu_custom_call.1} parent=71 // pred_check_branch
          %758 = sbr.rel (%p756) target = $region76
        $region75: #{tpu_custom_call.1} parent=71 // pred_region
          %s759 = sand.u32 %s187, 1
          %s760 = scalar_lea.sflag [#allocation5], %s759
          %s761 = sand.u32 %s187, 1
          %s762 = smul.addr %s761, 8
          %s763 = scalar_lea.vmem [#allocation11], %s762
          %765 = dma.done %s760, 128
        $region76: #{tpu_custom_call.1} parent=71 // pred_fallthru
          _
      $region72: #{tpu_custom_call.1} parent=5 // pred_fallthru
        _
    $region6: #{tpu_custom_call.1} parent=1 // loop_footer
      %s25 = sadd.s32 1, %s21
    $region7: #{tpu_custom_call.1} parent=1 // loop_footer_branch
      %20 = sbr.rel target = $region3
    $region8: #{tpu_custom_call.1} parent=1 // loop_exit
      _
    %766 = vsyncpa [#allocation4], 1
    %s767 = scalar_lea.sflag [#allocation4], 1
    %768 = vsyncpa %s767, 1
    %769 = vsyncpa [#allocation7], 1
    %770 = vsyncpa [#allocation10], 1
    %771 = vsyncpa [#allocation5], 1
    %s772 = scalar_lea.sflag [#allocation5], 1
    %773 = vsyncpa %s772, 1

</llo_original>
